<compile_context>
chip_gen: v7x
topology: tpu7x:2x2x1
jax: 0.10.0
libtpu: 0.0.40
codegen_flags: <defaults>
</compile_context>

<pallas_src>
import math

import jax
import jax.numpy as jnp
import numpy as np
from jax.experimental import pallas as pl
from jax.experimental.pallas import tpu as pltpu

ALPHA = 0.5
BETA = -0.5


# ---------------------------------------------------------------------------
# Kernels
# ---------------------------------------------------------------------------
def _imq_flat_kernel(p_blk_ref, p_flat_ref, s_ref, bw_alpha_ref, beta_log_bw_ref,
                     logk_ref, gradk_ref, pi_rep_ref):
    """Lane-dense path.  Grid = (i, j); per step:
         p_blk_ref        (TI, D)      rows of this i block
         p_flat_ref       (1, TJ*D)    [0, jj*D+d] = p[j*TJ+jj, d]
         s_ref            (D, TJ*D)    TJ stacked DxD identities   (constant)
         bw_alpha_ref     (1, TJ*D)    alpha*h[d], tiled           (constant)
         beta_log_bw_ref  (1, TJ*D)    beta*log(h[d]), tiled       (constant)
         logk/gradk_ref   (TI, TJ*D)
         pi_rep_ref       (TI, TJ*D)   VMEM scratch (j-invariant replication)
    """
    # Lane replication of the i rows on the (otherwise idle) MXU; it is
    # j-invariant, so compute it only once per i block (j == 0) and reuse.
    @pl.when(pl.program_id(1) == 0)
    def _():
        pi_rep_ref[...] = jnp.dot(p_blk_ref[...], s_ref[...],
                                  precision=jax.lax.Precision.HIGHEST,
                                  preferred_element_type=jnp.float32)

    delta = p_flat_ref[...] - pi_rep_ref[...]        # p[j,d] - p[i,d]
    denom = bw_alpha_ref[...] + delta * delta        # alpha*h_d + (p[j,d]-p[i,d])^2
    inv = pl.reciprocal(denom)                       # exact; avoids per-elem divide
    logk_ref[...] = (BETA * jnp.log(denom) - beta_log_bw_ref[...]).astype(logk_ref.dtype)
    gradk_ref[...] = ((2.0 * BETA) * delta * inv).astype(gradk_ref.dtype)


def _imq_3d_kernel(p_blk_ref, p_all_ref, bw_alpha_ref, beta_log_bw_ref,
                   logk_ref, gradk_ref):
    """Fallback with (TI, TJ, D) blocks — used when D % 128 == 0 (already
    lane-dense) or when the stacked-identity constant would be too large."""
    delta = p_all_ref[...][None, :, :] - p_blk_ref[...][:, None, :]   # (TI, TJ, D)
    denom = bw_alpha_ref[...][None] + delta * delta
    inv = pl.reciprocal(denom)
    logk_ref[...] = (BETA * jnp.log(denom) - beta_log_bw_ref[...][None]).astype(logk_ref.dtype)
    gradk_ref[...] = ((2.0 * BETA) * delta * inv).astype(gradk_ref.dtype)


# ---------------------------------------------------------------------------
# Tiling helpers (all static / trace-time Python)
# ---------------------------------------------------------------------------
def _vmem_limit_bytes():
    """Scoped VMEM limit sized from the actual chip (128 MiB on v5e/v6e,
    64 MiB per TC on v7x) with headroom; conservative fallback."""
    try:
        cap = int(pltpu.get_tpu_info().vmem_capacity_bytes)
    except Exception:
        cap = 64 * 1024 * 1024                       # safe for v7x
    return max(min(int(0.7 * cap), cap - (8 << 20)), 16 << 20)


def _round_up(x, m):
    return -(-x // m) * m


def _i_tile(n, ti_vmem_cap):
    """i tile: multiple of 8, within the VMEM cap, and small enough that the i
    axis keeps several grid steps (v7x megacore split + DMA/compute overlap).
    Rows are padded to a multiple of the tile — no full-extent fallback cliff."""
    n8 = _round_up(n, 8)
    ti_steps = max(8, (n8 // 8) // 8 * 8)            # aim for >= ~8 i steps
    ti = max(8, min(int(ti_vmem_cap), ti_steps, n8))
    ti = max(8, (ti // 8) * 8)
    return ti, _round_up(n, ti)


def _flat_tiles(n, d, itemsize, budget):
    """(ti, tj, ni_pad) for the flat path.  tj divides N and keeps tj*D a
    multiple of 128 (lane-aligned blocks), targeting ~2K lanes; ti comes from
    the remaining VMEM budget."""
    cands = [t for t in range(1, n + 1) if n % t == 0 and (t * d) % 128 == 0]
    if cands:
        pref = [t for t in cands if t * d >= 512] or cands
        tj = min(pref, key=lambda t: abs(t * d - 2048))
    else:
        tj = n                      # full extent: always a legal block shape
    tjd = tj * d
    # Per-step VMEM ~ 4 out buffers + scratch + ~3 temps per (ti x tjd) row,
    # plus single-buffered constants and the double-buffered p_flat chunk.
    avail = budget - itemsize * tjd * (d + 4)
    per_row = itemsize * (8 * tjd + 2 * d)
    ti_cap = (avail // per_row) if avail > 0 else 8
    ti, ni_pad = _i_tile(n, ti_cap)
    return ti, tj, ni_pad


def _3d_tiles(n, d, itemsize, budget):
    """(ti, tj, ni_pad) for the (TI, TJ, D) fallback path."""
    divs = [t for t in range(8, n, 8) if n % t == 0]

    def step_bytes(ti_, tj_):
        return itemsize * (8 * ti_ * tj_ * d + 2 * tj_ * d + 4 * d + 2 * ti_ * d)

    tj = n
    if step_bytes(8, tj) > budget and divs:
        fitting = [t for t in divs if step_bytes(8, t) <= budget]
        tj = max(fitting) if fitting else min(divs)
    avail = budget - itemsize * (2 * tj * d + 4 * d)
    per_row = itemsize * (8 * tj * d + 2 * d)
    ti_cap = (avail // per_row) if avail > 0 else 8
    ti, ni_pad = _i_tile(n, ti_cap)
    return ti, tj, ni_pad


# ---------------------------------------------------------------------------
# Wrapper
# ---------------------------------------------------------------------------
@jax.jit
def stein_imq_kernel(particles):
    """particles: (N, D) float32 -> (log_kernel, grad_log_kernel), both (N, N, D)."""
    N, D = particles.shape
    dt = particles.dtype
    itemsize = jnp.dtype(dt).itemsize

    # ---- bandwidth: per-dim lower median of strict-upper-triangle ||.||^2 ----
    # Built in (D, N, N) layout so the sort runs lane-dense along the minor axis.
    # TODO(synk): the median itself stays as XLA glue (jnp.sort), not a Pallas kernel.
    pt = particles.T                                            # (D, N)
    d_all = pt[:, None, :] - pt[:, :, None]                     # (D, N, N)
    nsq_sorted = jnp.sort((d_all * d_all).reshape(D, N * N), axis=-1)
    M = N * (N - 1) // 2
    # diagonal contributes N exact zeros; every off-diag value appears twice.
    median = nsq_sorted[:, N + 2 * ((M - 1) // 2)]              # (D,)
    h = median / math.log(N + 1)
    bandwidth = jnp.maximum(h, jnp.asarray(1e-9, dt))           # (D,)

    # Hoisted divisions:
    #   denom = alpha*h + nsq;  logk = beta*log(denom) - beta*log(h)
    #   gradk = 2*beta*delta / denom
    bw_alpha = (ALPHA * bandwidth).reshape(1, D).astype(dt)
    beta_log_bw = (BETA * jnp.log(bandwidth)).reshape(1, D).astype(dt)

    vmem_limit = _vmem_limit_bytes()
    budget = max(16 << 20, vmem_limit // 2)
    compiler_params = pltpu.CompilerParams(
        dimension_semantics=("parallel", "arbitrary"),   # megacore shards i rows
        vmem_limit_bytes=int(vmem_limit),
    )

    def const_spec(shape):          # fetched once -> single-buffer it
        return pl.BlockSpec(shape, lambda i, j: (0, 0),
                            pipeline_mode=pl.Buffered(buffer_count=1))

    use_flat = (D % 128) != 0
    if use_flat:
        ti, tj, ni_pad = _flat_tiles(N, D, itemsize, budget)
        if D * tj * D * itemsize > budget // 4:          # pathological huge-D case
            use_flat = False

    if use_flat:
        tjd = tj * D
        p_rows = particles if ni_pad == N else jnp.concatenate(
            [particles, jnp.zeros((ni_pad - N, D), dt)], axis=0)
        p_flat = particles.reshape(1, N * D)             # [0, j*D+d] = p[j,d]
        s_mat = jnp.tile(jnp.eye(D, dtype=dt), (1, tj))  # (D, tj*D) stacked identities
        bw_alpha_f = jnp.tile(bw_alpha, (1, tj))         # (1, tj*D)
        beta_log_bw_f = jnp.tile(beta_log_bw, (1, tj))   # (1, tj*D)

        logk, gradk = pl.pallas_call(
            _imq_flat_kernel,
            out_shape=(jax.ShapeDtypeStruct((ni_pad, N * D), dt),
                       jax.ShapeDtypeStruct((ni_pad, N * D), dt)),
            grid=(ni_pad // ti, N // tj),
            in_specs=[
                pl.BlockSpec((ti, D), lambda i, j: (i, 0)),     # i rows of particles
                pl.BlockSpec((1, tjd), lambda i, j: (0, j)),    # j chunk of flat p
                const_spec((D, tjd)),                           # stacked identities
                const_spec((1, tjd)),                           # alpha*h, tiled
                const_spec((1, tjd)),                           # beta*log(h), tiled
            ],
            out_specs=(
                pl.BlockSpec((ti, tjd), lambda i, j: (i, j)),
                pl.BlockSpec((ti, tjd), lambda i, j: (i, j)),
            ),
            scratch_shapes=[pltpu.VMEM((ti, tjd), jnp.float32)],  # hoisted pi_rep
            compiler_params=compiler_params,
        )(p_rows, p_flat, s_mat, bw_alpha_f, beta_log_bw_f)
        # Row-major (N, N*D) has identical layout to (N, N, D): free reshape.
        return logk[:N].reshape(N, N, D), gradk[:N].reshape(N, N, D)

    # ---- fallback: (TI, TJ, D) blocks (D % 128 == 0, or huge-D corner case) ----
    ti, tj, ni_pad = _3d_tiles(N, D, itemsize, budget)
    p_rows = particles if ni_pad == N else jnp.concatenate(
        [particles, jnp.zeros((ni_pad - N, D), dt)], axis=0)

    logk, gradk = pl.pallas_call(
        _imq_3d_kernel,
        out_shape=(jax.ShapeDtypeStruct((ni_pad, N, D), dt),
                   jax.ShapeDtypeStruct((ni_pad, N, D), dt)),
        grid=(ni_pad // ti, N // tj),
        in_specs=[
            pl.BlockSpec((ti, D), lambda i, j: (i, 0)),
            pl.BlockSpec((tj, D), lambda i, j: (j, 0)),
            const_spec((1, D)),
            const_spec((1, D)),
        ],
        out_specs=(
            pl.BlockSpec((ti, tj, D), lambda i, j: (i, j, 0)),
            pl.BlockSpec((ti, tj, D), lambda i, j: (i, j, 0)),
        ),
        compiler_params=compiler_params,
    )(p_rows, particles, bw_alpha, beta_log_bw)
    return logk[:N], gradk[:N]


# ---------------------------------------------------------------------------
# Pure-JAX reference (mirrors the torch forward exactly) for verification
# ---------------------------------------------------------------------------
def _reference(particles):
    N = particles.shape[0]
    delta = particles[None, :, :] - particles[:, None, :]
    norm_sq = delta ** 2
    iu, ju = np.triu_indices(N, k=1)
    sel = norm_sq[iu, ju, :]
    srt = jnp.sort(sel, axis=0)
    median = srt[(sel.shape[0] - 1) // 2]            # torch-style lower median
    h = median / math.log(N + 1)
    bw = jnp.maximum(h, 1e-9)
    base = ALPHA + norm_sq / bw
    return BETA * jnp.log(base), 2.0 * BETA * delta / bw / base


if __name__ == "__main__":
    key = jax.random.PRNGKey(0)
    test_shapes = [
        (8, 32),     # tiny, single grid step
        (20, 32),    # N not a multiple of 8 -> exercises row padding
        (96, 48),    # multi-step grid on i and j -> exercises the pi_rep hoist
        (16, 128),   # D % 128 == 0 -> 3-D lane-dense fallback path
    ]
    for (N, D) in test_shapes:
        key, sub = jax.random.split(key)
        particles = jax.random.normal(sub, (N, D), dtype=jnp.float32)

        log_k, grad_log_k = stein_imq_kernel(particles)
        jax.block_until_ready((log_k, grad_log_k))

        ref_log_k, ref_grad_log_k = _reference(particles)
        assert log_k.shape == (N, N, D) and grad_log_k.shape == (N, N, D)
        np.testing.assert_allclose(np.asarray(log_k), np.asarray(ref_log_k),
                                   rtol=1e-5, atol=1e-5)
        np.testing.assert_allclose(np.asarray(grad_log_k), np.asarray(ref_grad_log_k),
                                   rtol=1e-5, atol=1e-5)

    print("KERNEL_OK")
</pallas_src>

<mosaic_0001>
module attributes {stable_mosaic.version = 11 : i64} {
  func.func @_imq_flat_kernel(%arg0: i32, %arg1: i32, %arg2: memref<8x32xf32, #tpu.memory_space<vmem>>, %arg3: memref<1x256xf32, #tpu.memory_space<vmem>>, %arg4: memref<32x256xf32, #tpu.memory_space<vmem>>, %arg5: memref<1x256xf32, #tpu.memory_space<vmem>>, %arg6: memref<1x256xf32, #tpu.memory_space<vmem>>, %arg7: memref<8x256xf32, #tpu.memory_space<vmem>>, %arg8: memref<8x256xf32, #tpu.memory_space<vmem>>, %arg9: memref<8x256xf32, #tpu.memory_space<vmem>>) attributes {dimension_semantics = [#tpu.dimension_semantics<parallel>, #tpu.dimension_semantics<arbitrary>], iteration_bounds = array<i64: 1, 1>, scalar_prefetch = 0 : i64, scratch_operands = 1 : i64, tpu.core_type = #tpu.core_type<tc>, window_params = [{transform_indices = @transform_0, window_bounds = array<i64: 8, 32>}, {transform_indices = @transform_1, window_bounds = array<i64: 1, 256>}, {pipeline_mode = #tpu.pipeline_mode<synchronous>, transform_indices = @transform_2, window_bounds = array<i64: 32, 256>}, {pipeline_mode = #tpu.pipeline_mode<synchronous>, transform_indices = @transform_3, window_bounds = array<i64: 1, 256>}, {pipeline_mode = #tpu.pipeline_mode<synchronous>, transform_indices = @transform_4, window_bounds = array<i64: 1, 256>}, {transform_indices = @transform_5, window_bounds = array<i64: 8, 256>}, {transform_indices = @transform_6, window_bounds = array<i64: 8, 256>}]} {
    %c0_i32 = arith.constant 0 : i32
    %0 = arith.cmpi eq, %arg1, %c0_i32 : i32
    %1 = arith.extui %0 : i1 to i32
    %c0_i32_0 = arith.constant 0 : i32
    %2 = arith.cmpi ne, %1, %c0_i32_0 : i32
    scf.if %2 {
      %c0_13 = arith.constant 0 : index
      %c0_14 = arith.constant 0 : index
      %23 = vector.load %arg2[%c0_13, %c0_14] : memref<8x32xf32, #tpu.memory_space<vmem>>, vector<8x32xf32>
      %c0_15 = arith.constant 0 : index
      %c0_16 = arith.constant 0 : index
      %24 = vector.load %arg4[%c0_15, %c0_16] : memref<32x256xf32, #tpu.memory_space<vmem>>, vector<32x256xf32>
      %cst_17 = arith.constant dense<0.000000e+00> : vector<8x256xf32>
      %25 = tpu.matmul %23, %24, %cst_17 {dimension_numbers = #tpu.dot_dimension_numbers<[1], [0], [0], [1], [0, 0, 1, 1], [], []>, precision = #tpu.contract_precision<fp32>} : vector<8x32xf32>, vector<32x256xf32>, vector<8x256xf32> -> vector<8x256xf32>
      %c0_18 = arith.constant 0 : index
      %c0_19 = arith.constant 0 : index
      %26 = vector.load %arg9[%c0_18, %c0_19] : memref<8x256xf32, #tpu.memory_space<vmem>>, vector<8x256xf32>
      tpu.vector_store %arg9[%c0_18, %c0_19], %25 {strides = array<i32>} : memref<8x256xf32, #tpu.memory_space<vmem>>, vector<8x256xf32>,
    } else {
    }
    %c0 = arith.constant 0 : index
    %c0_1 = arith.constant 0 : index
    %3 = vector.load %arg3[%c0, %c0_1] : memref<1x256xf32, #tpu.memory_space<vmem>>, vector<1x256xf32>
    %c0_2 = arith.constant 0 : index
    %c0_3 = arith.constant 0 : index
    %4 = vector.load %arg9[%c0_2, %c0_3] : memref<8x256xf32, #tpu.memory_space<vmem>>, vector<8x256xf32>
    %5 = vector.broadcast %3 : vector<1x256xf32> to vector<8x256xf32>
    %6 = arith.subf %5, %4 : vector<8x256xf32>
    %c0_4 = arith.constant 0 : index
    %c0_5 = arith.constant 0 : index
    %7 = vector.load %arg5[%c0_4, %c0_5] : memref<1x256xf32, #tpu.memory_space<vmem>>, vector<1x256xf32>
    %8 = arith.mulf %6, %6 : vector<8x256xf32>
    %9 = vector.broadcast %7 : vector<1x256xf32> to vector<8x256xf32>
    %10 = arith.addf %9, %8 : vector<8x256xf32>
    %11 = tpu.reciprocal %10 : vector<8x256xf32> -> vector<8x256xf32>
    %12 = math.log %10 : vector<8x256xf32>
    %cst = arith.constant -5.000000e-01 : f32
    %13 = vector.broadcast %cst : f32 to vector<8x256xf32>
    %14 = arith.mulf %13, %12 : vector<8x256xf32>
    %c0_6 = arith.constant 0 : index
    %c0_7 = arith.constant 0 : index
    %15 = vector.load %arg6[%c0_6, %c0_7] : memref<1x256xf32, #tpu.memory_space<vmem>>, vector<1x256xf32>
    %16 = vector.broadcast %15 : vector<1x256xf32> to vector<8x256xf32>
    %17 = arith.subf %14, %16 : vector<8x256xf32>
    %c0_8 = arith.constant 0 : index
    %c0_9 = arith.constant 0 : index
    %18 = vector.load %arg7[%c0_8, %c0_9] : memref<8x256xf32, #tpu.memory_space<vmem>>, vector<8x256xf32>
    tpu.vector_store %arg7[%c0_8, %c0_9], %17 {strides = array<i32>} : memref<8x256xf32, #tpu.memory_space<vmem>>, vector<8x256xf32>,
    %cst_10 = arith.constant -1.000000e+00 : f32
    %19 = vector.broadcast %cst_10 : f32 to vector<8x256xf32>
    %20 = arith.mulf %19, %6 : vector<8x256xf32>
    %21 = arith.mulf %20, %11 : vector<8x256xf32>
    %c0_11 = arith.constant 0 : index
    %c0_12 = arith.constant 0 : index
    %22 = vector.load %arg8[%c0_11, %c0_12] : memref<8x256xf32, #tpu.memory_space<vmem>>, vector<8x256xf32>
    tpu.vector_store %arg8[%c0_11, %c0_12], %21 {strides = array<i32>} : memref<8x256xf32, #tpu.memory_space<vmem>>, vector<8x256xf32>,
    return
  }
  func.func @transform_0(%arg0: i32, %arg1: i32) -> (i32, i32) {
    %c0_i32 = arith.constant 0 : i32
    %c0_i32_0 = arith.constant 0 : i32
    return %arg0, %c0_i32 : i32, i32
  }
  func.func @transform_1(%arg0: i32, %arg1: i32) -> (i32, i32) {
    %c0_i32 = arith.constant 0 : i32
    %c0_i32_0 = arith.constant 0 : i32
    return %c0_i32, %arg1 : i32, i32
  }
  func.func @transform_2(%arg0: i32, %arg1: i32) -> (i32, i32) {
    %c0_i32 = arith.constant 0 : i32
    %c0_i32_0 = arith.constant 0 : i32
    %c0_i32_1 = arith.constant 0 : i32
    return %c0_i32, %c0_i32_0 : i32, i32
  }
  func.func @transform_3(%arg0: i32, %arg1: i32) -> (i32, i32) {
    %c0_i32 = arith.constant 0 : i32
    %c0_i32_0 = arith.constant 0 : i32
    %c0_i32_1 = arith.constant 0 : i32
    return %c0_i32, %c0_i32_0 : i32, i32
  }
  func.func @transform_4(%arg0: i32, %arg1: i32) -> (i32, i32) {
    %c0_i32 = arith.constant 0 : i32
    %c0_i32_0 = arith.constant 0 : i32
    %c0_i32_1 = arith.constant 0 : i32
    return %c0_i32, %c0_i32_0 : i32, i32
  }
  func.func @transform_5(%arg0: i32, %arg1: i32) -> (i32, i32) {
    %c0_i32 = arith.constant 0 : i32
    return %arg0, %arg1 : i32, i32
  }
  func.func @transform_6(%arg0: i32, %arg1: i32) -> (i32, i32) {
    %c0_i32 = arith.constant 0 : i32
    return %arg0, %arg1 : i32, i32
  }
}

</mosaic_0001>

<llo_original>
// kernel: tile.17
$region0: #{tile.17}
  %s0 = inlined_call_operand.vmem [shape: f32[32,8,32], index: 0, kind: input, shape index: {}]
  %s1 = inlined_call_operand.vmem [shape: f32[32,256], index: 1, kind: output, shape index: {}]
  %v2 = vld [vmem:[%s0] ss:$4 sm:$0xff]
  %vm3 = vcmask 261120
  %4 = vst.msk [vmem:[%s1] ss:$8 sm:$0x3] %vm3, %v2
  %s5 = scalar_lea.vmem %s1, 4294967281
  %6 = vst.msk [vmem:[%s5] ss:$8 sm:$0xc] %vm3, %v2
  %s7 = scalar_lea.vmem %s1, 4294967266
  %8 = vst.msk [vmem:[%s7] ss:$8 sm:$0x30] %vm3, %v2
  %s9 = scalar_lea.vmem %s1, 4294967251
  %10 = vst.msk [vmem:[%s9] ss:$8 sm:$0xc0] %vm3, %v2
  %s11 = scalar_lea.vmem %s0, 32
  %v12 = vld [vmem:[%s11] ss:$4 sm:$0xff]
  %vm13 = vcmask 261120
  %s14 = scalar_lea.vmem %s1, 4
  %15 = vst.msk [vmem:[%s14] ss:$8 sm:$0x3] %vm13, %v12
  %s16 = scalar_lea.vmem %s1, 4294967285
  %17 = vst.msk [vmem:[%s16] ss:$8 sm:$0xc] %vm13, %v12
  %s18 = scalar_lea.vmem %s1, 4294967270
  %19 = vst.msk [vmem:[%s18] ss:$8 sm:$0x30] %vm13, %v12
  %s20 = scalar_lea.vmem %s1, 4294967255
  %21 = vst.msk [vmem:[%s20] ss:$8 sm:$0xc0] %vm13, %v12
  %s22 = scalar_lea.vmem %s0, 64
  %v23 = vld [vmem:[%s22] ss:$4 sm:$0xff]
  %vm24 = vcmask 261120
  %s25 = scalar_lea.vmem %s1, 16
  %26 = vst.msk [vmem:[%s25] ss:$8 sm:$0x3] %vm24, %v23
  %s27 = scalar_lea.vmem %s1, 1
  %28 = vst.msk [vmem:[%s27] ss:$8 sm:$0xc] %vm24, %v23
  %s29 = scalar_lea.vmem %s1, 4294967282
  %30 = vst.msk [vmem:[%s29] ss:$8 sm:$0x30] %vm24, %v23
  %s31 = scalar_lea.vmem %s1, 4294967267
  %32 = vst.msk [vmem:[%s31] ss:$8 sm:$0xc0] %vm24, %v23
  %s33 = scalar_lea.vmem %s0, 96
  %v34 = vld [vmem:[%s33] ss:$4 sm:$0xff]
  %vm35 = vcmask 261120
  %s36 = scalar_lea.vmem %s1, 20
  %37 = vst.msk [vmem:[%s36] ss:$8 sm:$0x3] %vm35, %v34
  %s38 = scalar_lea.vmem %s1, 5
  %39 = vst.msk [vmem:[%s38] ss:$8 sm:$0xc] %vm35, %v34
  %s40 = scalar_lea.vmem %s1, 4294967286
  %41 = vst.msk [vmem:[%s40] ss:$8 sm:$0x30] %vm35, %v34
  %s42 = scalar_lea.vmem %s1, 4294967271
  %43 = vst.msk [vmem:[%s42] ss:$8 sm:$0xc0] %vm35, %v34
  %s44 = scalar_lea.vmem %s0, 128
  %v45 = vld [vmem:[%s44] ss:$4 sm:$0xff]
  %vm46 = vcmask 261120
  %s47 = scalar_lea.vmem %s1, 32
  %48 = vst.msk [vmem:[%s47] ss:$8 sm:$0x3] %vm46, %v45
  %s49 = scalar_lea.vmem %s1, 17
  %50 = vst.msk [vmem:[%s49] ss:$8 sm:$0xc] %vm46, %v45
  %s51 = scalar_lea.vmem %s1, 2
  %52 = vst.msk [vmem:[%s51] ss:$8 sm:$0x30] %vm46, %v45
  %s53 = scalar_lea.vmem %s1, 4294967283
  %54 = vst.msk [vmem:[%s53] ss:$8 sm:$0xc0] %vm46, %v45
  %s55 = scalar_lea.vmem %s0, 160
  %v56 = vld [vmem:[%s55] ss:$4 sm:$0xff]
  %vm57 = vcmask 261120
  %s58 = scalar_lea.vmem %s1, 36
  %59 = vst.msk [vmem:[%s58] ss:$8 sm:$0x3] %vm57, %v56
  %s60 = scalar_lea.vmem %s1, 21
  %61 = vst.msk [vmem:[%s60] ss:$8 sm:$0xc] %vm57, %v56
  %s62 = scalar_lea.vmem %s1, 6
  %63 = vst.msk [vmem:[%s62] ss:$8 sm:$0x30] %vm57, %v56
  %s64 = scalar_lea.vmem %s1, 4294967287
  %65 = vst.msk [vmem:[%s64] ss:$8 sm:$0xc0] %vm57, %v56
  %s66 = scalar_lea.vmem %s0, 192
  %v67 = vld [vmem:[%s66] ss:$4 sm:$0xff]
  %vm68 = vcmask 261120
  %s69 = scalar_lea.vmem %s1, 48
  %70 = vst.msk [vmem:[%s69] ss:$8 sm:$0x3] %vm68, %v67
  %s71 = scalar_lea.vmem %s1, 33
  %72 = vst.msk [vmem:[%s71] ss:$8 sm:$0xc] %vm68, %v67
  %s73 = scalar_lea.vmem %s1, 18
  %74 = vst.msk [vmem:[%s73] ss:$8 sm:$0x30] %vm68, %v67
  %s75 = scalar_lea.vmem %s1, 3
  %76 = vst.msk [vmem:[%s75] ss:$8 sm:$0xc0] %vm68, %v67
  %s77 = scalar_lea.vmem %s0, 224
  %v78 = vld [vmem:[%s77] ss:$4 sm:$0xff]
  %vm79 = vcmask 261120
  %s80 = scalar_lea.vmem %s1, 52
  %81 = vst.msk [vmem:[%s80] ss:$8 sm:$0x3] %vm79, %v78
  %s82 = scalar_lea.vmem %s1, 37
  %83 = vst.msk [vmem:[%s82] ss:$8 sm:$0xc] %vm79, %v78
  %s84 = scalar_lea.vmem %s1, 22
  %85 = vst.msk [vmem:[%s84] ss:$8 sm:$0x30] %vm79, %v78
  %s86 = scalar_lea.vmem %s1, 7
  %87 = vst.msk [vmem:[%s86] ss:$8 sm:$0xc0] %vm79, %v78
  %s88 = scalar_lea.vmem %s0, 3
  %v89 = vld [vmem:[%s88] ss:$8 sm:$0xf]
  %s90 = scalar_lea.vmem %s0, 3
  %v91 = vld [vmem:[%s90] ss:$8 sm:$0xf0]
  %vm92 = vcmask 1047556
  %v93 = vsel %vm92, %v91, %v89
  %94 = vrot.lane.b32.xlu0 %v93, 96
  %v95 = vpop.permute.xlu0 %94
  %vm96 = vcmask 1048320
  %97 = vst.msk [vmem:[%s1] sm:$0xff] %vm96, %v95
  %s98 = scalar_lea.vmem %s0, 131
  %v99 = vld [vmem:[%s98] ss:$8 sm:$0xf]
  %s100 = scalar_lea.vmem %s0, 131
  %v101 = vld [vmem:[%s100] ss:$8 sm:$0xf0]
  %vm102 = vcmask 1047556
  %v103 = vsel %vm102, %v101, %v99
  %104 = vrot.lane.b32.xlu0 %v103, 96
  %v105 = vpop.permute.xlu0 %104
  %vm106 = vcmask 1048320
  %s107 = scalar_lea.vmem %s1, 32
  %108 = vst.msk [vmem:[%s107] sm:$0xff] %vm106, %v105
  %s109 = scalar_lea.vmem %s0, 7
  %v110 = vld [vmem:[%s109] ss:$8 sm:$0xf]
  %s111 = scalar_lea.vmem %s0, 7
  %v112 = vld [vmem:[%s111] ss:$8 sm:$0xf0]
  %vm113 = vcmask 1047556
  %v114 = vsel %vm113, %v112, %v110
  %115 = vrot.lane.b32.xlu0 %v114, 96
  %v116 = vpop.permute.xlu0 %115
  %vm117 = vcmask 1048320
  %s118 = scalar_lea.vmem %s1, 8
  %119 = vst.msk [vmem:[%s118] sm:$0xff] %vm117, %v116
  %s120 = scalar_lea.vmem %s0, 135
  %v121 = vld [vmem:[%s120] ss:$8 sm:$0xf]
  %s122 = scalar_lea.vmem %s0, 135
  %v123 = vld [vmem:[%s122] ss:$8 sm:$0xf0]
  %vm124 = vcmask 1047556
  %v125 = vsel %vm124, %v123, %v121
  %126 = vrot.lane.b32.xlu0 %v125, 96
  %v127 = vpop.permute.xlu0 %126
  %vm128 = vcmask 1048320
  %s129 = scalar_lea.vmem %s1, 40
  %130 = vst.msk [vmem:[%s129] sm:$0xff] %vm128, %v127
  %s131 = scalar_lea.vmem %s0, 67
  %v132 = vld [vmem:[%s131] ss:$8 sm:$0xf]
  %s133 = scalar_lea.vmem %s0, 67
  %v134 = vld [vmem:[%s133] ss:$8 sm:$0xf0]
  %vm135 = vcmask 1047556
  %v136 = vsel %vm135, %v134, %v132
  %137 = vrot.lane.b32.xlu0 %v136, 96
  %v138 = vpop.permute.xlu0 %137
  %vm139 = vcmask 1048320
  %s140 = scalar_lea.vmem %s1, 16
  %141 = vst.msk [vmem:[%s140] sm:$0xff] %vm139, %v138
  %s142 = scalar_lea.vmem %s0, 195
  %v143 = vld [vmem:[%s142] ss:$8 sm:$0xf]
  %s144 = scalar_lea.vmem %s0, 195
  %v145 = vld [vmem:[%s144] ss:$8 sm:$0xf0]
  %vm146 = vcmask 1047556
  %v147 = vsel %vm146, %v145, %v143
  %148 = vrot.lane.b32.xlu0 %v147, 96
  %v149 = vpop.permute.xlu0 %148
  %vm150 = vcmask 1048320
  %s151 = scalar_lea.vmem %s1, 48
  %152 = vst.msk [vmem:[%s151] sm:$0xff] %vm150, %v149
  %s153 = scalar_lea.vmem %s0, 71
  %v154 = vld [vmem:[%s153] ss:$8 sm:$0xf]
  %s155 = scalar_lea.vmem %s0, 71
  %v156 = vld [vmem:[%s155] ss:$8 sm:$0xf0]
  %vm157 = vcmask 1047556
  %v158 = vsel %vm157, %v156, %v154
  %159 = vrot.lane.b32.xlu0 %v158, 96
  %v160 = vpop.permute.xlu0 %159
  %vm161 = vcmask 1048320
  %s162 = scalar_lea.vmem %s1, 24
  %163 = vst.msk [vmem:[%s162] sm:$0xff] %vm161, %v160
  %s164 = scalar_lea.vmem %s0, 199
  %v165 = vld [vmem:[%s164] ss:$8 sm:$0xf]
  %s166 = scalar_lea.vmem %s0, 199
  %v167 = vld [vmem:[%s166] ss:$8 sm:$0xf0]
  %vm168 = vcmask 1047556
  %v169 = vsel %vm168, %v167, %v165
  %170 = vrot.lane.b32.xlu0 %v169, 96
  %v171 = vpop.permute.xlu0 %170
  %vm172 = vcmask 1048320
  %s173 = scalar_lea.vmem %s1, 56
  %174 = vst.msk [vmem:[%s173] sm:$0xff] %vm172, %v171
  %s175 = scalar_lea.vmem %s0, 2
  %v176 = vld [vmem:[%s175] ss:$8 sm:$0xf]
  %s177 = scalar_lea.vmem %s0, 2
  %v178 = vld [vmem:[%s177] ss:$8 sm:$0xf0]
  %vm179 = vcmask 1047556
  %v180 = vsel %vm179, %v178, %v176
  %181 = vrot.lane.b32.xlu0 %v180, 64
  %v182 = vpop.permute.xlu0 %181
  %vm183 = vcmask 785920
  %184 = vst.msk [vmem:[%s1] sm:$0xff] %vm183, %v182
  %s185 = scalar_lea.vmem %s0, 130
  %v186 = vld [vmem:[%s185] ss:$8 sm:$0xf]
  %s187 = scalar_lea.vmem %s0, 130
  %v188 = vld [vmem:[%s187] ss:$8 sm:$0xf0]
  %vm189 = vcmask 1047556
  %v190 = vsel %vm189, %v188, %v186
  %191 = vrot.lane.b32.xlu0 %v190, 64
  %v192 = vpop.permute.xlu0 %191
  %vm193 = vcmask 785920
  %s194 = scalar_lea.vmem %s1, 32
  %195 = vst.msk [vmem:[%s194] sm:$0xff] %vm193, %v192
  %s196 = scalar_lea.vmem %s0, 6
  %v197 = vld [vmem:[%s196] ss:$8 sm:$0xf]
  %s198 = scalar_lea.vmem %s0, 6
  %v199 = vld [vmem:[%s198] ss:$8 sm:$0xf0]
  %vm200 = vcmask 1047556
  %v201 = vsel %vm200, %v199, %v197
  %202 = vrot.lane.b32.xlu0 %v201, 64
  %v203 = vpop.permute.xlu0 %202
  %vm204 = vcmask 785920
  %s205 = scalar_lea.vmem %s1, 8
  %206 = vst.msk [vmem:[%s205] sm:$0xff] %vm204, %v203
  %s207 = scalar_lea.vmem %s0, 134
  %v208 = vld [vmem:[%s207] ss:$8 sm:$0xf]
  %s209 = scalar_lea.vmem %s0, 134
  %v210 = vld [vmem:[%s209] ss:$8 sm:$0xf0]
  %vm211 = vcmask 1047556
  %v212 = vsel %vm211, %v210, %v208
  %213 = vrot.lane.b32.xlu0 %v212, 64
  %v214 = vpop.permute.xlu0 %213
  %vm215 = vcmask 785920
  %s216 = scalar_lea.vmem %s1, 40
  %217 = vst.msk [vmem:[%s216] sm:$0xff] %vm215, %v214
  %s218 = scalar_lea.vmem %s0, 66
  %v219 = vld [vmem:[%s218] ss:$8 sm:$0xf]
  %s220 = scalar_lea.vmem %s0, 66
  %v221 = vld [vmem:[%s220] ss:$8 sm:$0xf0]
  %vm222 = vcmask 1047556
  %v223 = vsel %vm222, %v221, %v219
  %224 = vrot.lane.b32.xlu0 %v223, 64
  %v225 = vpop.permute.xlu0 %224
  %vm226 = vcmask 785920
  %s227 = scalar_lea.vmem %s1, 16
  %228 = vst.msk [vmem:[%s227] sm:$0xff] %vm226, %v225
  %s229 = scalar_lea.vmem %s0, 194
  %v230 = vld [vmem:[%s229] ss:$8 sm:$0xf]
  %s231 = scalar_lea.vmem %s0, 194
  %v232 = vld [vmem:[%s231] ss:$8 sm:$0xf0]
  %vm233 = vcmask 1047556
  %v234 = vsel %vm233, %v232, %v230
  %235 = vrot.lane.b32.xlu0 %v234, 64
  %v236 = vpop.permute.xlu0 %235
  %vm237 = vcmask 785920
  %s238 = scalar_lea.vmem %s1, 48
  %239 = vst.msk [vmem:[%s238] sm:$0xff] %vm237, %v236
  %s240 = scalar_lea.vmem %s0, 70
  %v241 = vld [vmem:[%s240] ss:$8 sm:$0xf]
  %s242 = scalar_lea.vmem %s0, 70
  %v243 = vld [vmem:[%s242] ss:$8 sm:$0xf0]
  %vm244 = vcmask 1047556
  %v245 = vsel %vm244, %v243, %v241
  %246 = vrot.lane.b32.xlu0 %v245, 64
  %v247 = vpop.permute.xlu0 %246
  %vm248 = vcmask 785920
  %s249 = scalar_lea.vmem %s1, 24
  %250 = vst.msk [vmem:[%s249] sm:$0xff] %vm248, %v247
  %s251 = scalar_lea.vmem %s0, 198
  %v252 = vld [vmem:[%s251] ss:$8 sm:$0xf]
  %s253 = scalar_lea.vmem %s0, 198
  %v254 = vld [vmem:[%s253] ss:$8 sm:$0xf0]
  %vm255 = vcmask 1047556
  %v256 = vsel %vm255, %v254, %v252
  %257 = vrot.lane.b32.xlu0 %v256, 64
  %v258 = vpop.permute.xlu0 %257
  %vm259 = vcmask 785920
  %s260 = scalar_lea.vmem %s1, 56
  %261 = vst.msk [vmem:[%s260] sm:$0xff] %vm259, %v258
  %s262 = scalar_lea.vmem %s0, 1
  %v263 = vld [vmem:[%s262] ss:$8 sm:$0xf]
  %s264 = scalar_lea.vmem %s0, 1
  %v265 = vld [vmem:[%s264] ss:$8 sm:$0xf0]
  %vm266 = vcmask 1047556
  %v267 = vsel %vm266, %v265, %v263
  %268 = vrot.lane.b32.xlu0 %v267, 32
  %v269 = vpop.permute.xlu0 %268
  %vm270 = vcmask 523520
  %271 = vst.msk [vmem:[%s1] sm:$0xff] %vm270, %v269
  %s272 = scalar_lea.vmem %s0, 129
  %v273 = vld [vmem:[%s272] ss:$8 sm:$0xf]
  %s274 = scalar_lea.vmem %s0, 129
  %v275 = vld [vmem:[%s274] ss:$8 sm:$0xf0]
  %vm276 = vcmask 1047556
  %v277 = vsel %vm276, %v275, %v273
  %278 = vrot.lane.b32.xlu0 %v277, 32
  %v279 = vpop.permute.xlu0 %278
  %vm280 = vcmask 523520
  %s281 = scalar_lea.vmem %s1, 32
  %282 = vst.msk [vmem:[%s281] sm:$0xff] %vm280, %v279
  %s283 = scalar_lea.vmem %s0, 5
  %v284 = vld [vmem:[%s283] ss:$8 sm:$0xf]
  %s285 = scalar_lea.vmem %s0, 5
  %v286 = vld [vmem:[%s285] ss:$8 sm:$0xf0]
  %vm287 = vcmask 1047556
  %v288 = vsel %vm287, %v286, %v284
  %289 = vrot.lane.b32.xlu0 %v288, 32
  %v290 = vpop.permute.xlu0 %289
  %vm291 = vcmask 523520
  %s292 = scalar_lea.vmem %s1, 8
  %293 = vst.msk [vmem:[%s292] sm:$0xff] %vm291, %v290
  %s294 = scalar_lea.vmem %s0, 133
  %v295 = vld [vmem:[%s294] ss:$8 sm:$0xf]
  %s296 = scalar_lea.vmem %s0, 133
  %v297 = vld [vmem:[%s296] ss:$8 sm:$0xf0]
  %vm298 = vcmask 1047556
  %v299 = vsel %vm298, %v297, %v295
  %300 = vrot.lane.b32.xlu0 %v299, 32
  %v301 = vpop.permute.xlu0 %300
  %vm302 = vcmask 523520
  %s303 = scalar_lea.vmem %s1, 40
  %304 = vst.msk [vmem:[%s303] sm:$0xff] %vm302, %v301
  %s305 = scalar_lea.vmem %s0, 65
  %v306 = vld [vmem:[%s305] ss:$8 sm:$0xf]
  %s307 = scalar_lea.vmem %s0, 65
  %v308 = vld [vmem:[%s307] ss:$8 sm:$0xf0]
  %vm309 = vcmask 1047556
  %v310 = vsel %vm309, %v308, %v306
  %311 = vrot.lane.b32.xlu0 %v310, 32
  %v312 = vpop.permute.xlu0 %311
  %vm313 = vcmask 523520
  %s314 = scalar_lea.vmem %s1, 16
  %315 = vst.msk [vmem:[%s314] sm:$0xff] %vm313, %v312
  %s316 = scalar_lea.vmem %s0, 193
  %v317 = vld [vmem:[%s316] ss:$8 sm:$0xf]
  %s318 = scalar_lea.vmem %s0, 193
  %v319 = vld [vmem:[%s318] ss:$8 sm:$0xf0]
  %vm320 = vcmask 1047556
  %v321 = vsel %vm320, %v319, %v317
  %322 = vrot.lane.b32.xlu0 %v321, 32
  %v323 = vpop.permute.xlu0 %322
  %vm324 = vcmask 523520
  %s325 = scalar_lea.vmem %s1, 48
  %326 = vst.msk [vmem:[%s325] sm:$0xff] %vm324, %v323
  %s327 = scalar_lea.vmem %s0, 69
  %v328 = vld [vmem:[%s327] ss:$8 sm:$0xf]
  %s329 = scalar_lea.vmem %s0, 69
  %v330 = vld [vmem:[%s329] ss:$8 sm:$0xf0]
  %vm331 = vcmask 1047556
  %v332 = vsel %vm331, %v330, %v328
  %333 = vrot.lane.b32.xlu0 %v332, 32
  %v334 = vpop.permute.xlu0 %333
  %vm335 = vcmask 523520
  %s336 = scalar_lea.vmem %s1, 24
  %337 = vst.msk [vmem:[%s336] sm:$0xff] %vm335, %v334
  %s338 = scalar_lea.vmem %s0, 197
  %v339 = vld [vmem:[%s338] ss:$8 sm:$0xf]
  %s340 = scalar_lea.vmem %s0, 197
  %v341 = vld [vmem:[%s340] ss:$8 sm:$0xf0]
  %vm342 = vcmask 1047556
  %v343 = vsel %vm342, %v341, %v339
  %344 = vrot.lane.b32.xlu0 %v343, 32
  %v345 = vpop.permute.xlu0 %344
  %vm346 = vcmask 523520
  %s347 = scalar_lea.vmem %s1, 56
  %348 = vst.msk [vmem:[%s347] sm:$0xff] %vm346, %v345

// kernel: stein_imq_kernel.1
$region0: #{stein_imq_kernel.1}
  #allocation0 [shape = 'u32[]', space=smem, size = 0x4, offset = 0x4, fixed_abs, tag = 'smem constant byte address 0x4 - core index']
  #allocation1 [shape = 'u32[144,128]{1,0:T(1,128)}', space=vmem, size = 0x12000, scoped, tag = 'internal scratch']
  #allocation2 [shape = 'f32[8,256]{1,0:T(8,128)}', space=vmem, size = 0x2000, scoped, tag = 'scratch operand']
  %s0 = inlined_call_operand.vmem [shape: f32[8,32], index: 0, kind: input, shape index: {}]
  %s1 = inlined_call_operand.vmem [shape: f32[1,256], index: 1, kind: input, shape index: {}]
  %s2 = inlined_call_operand.vmem [shape: f32[32,256], index: 2, kind: input, shape index: {}]
  %s3 = inlined_call_operand.vmem [shape: f32[1,256], index: 3, kind: input, shape index: {}]
  %s4 = inlined_call_operand.vmem [shape: f32[1,256], index: 4, kind: input, shape index: {}]
  %s5 = inlined_call_operand.vmem [shape: f32[8,256], index: 5, kind: output, shape index: {0}]
  %s6 = inlined_call_operand.vmem [shape: f32[8,256], index: 6, kind: output, shape index: {1}]
  %7 = xla_tuple %s5, %s6
  %s8 = sld [smem:[#allocation0]]
  $region42: #{stein_imq_kernel.1} parent=0
    _
  %s10 = ssub.s32 1, %s8
  %s11 = scalar_select 0, %s10, %s8
  // Predicated region
  $region2: #{stein_imq_kernel.1} parent=0 // pred_check
    _
  $region3: #{stein_imq_kernel.1} parent=0 // pred_check_branch
    %13 = sbr.rel (0) target = $region5
  $region4: #{stein_imq_kernel.1} parent=0 // pred_region
    _
  $region5: #{stein_imq_kernel.1} parent=0 // pred_fallthru
    _
  // Predicated region
  $region6: #{stein_imq_kernel.1} parent=0 // pred_check
    _
  $region7: #{stein_imq_kernel.1} parent=0 // pred_check_branch
    %15 = sbr.rel (0) target = $region9
  $region8: #{stein_imq_kernel.1} parent=0 // pred_region
    _
  $region9: #{stein_imq_kernel.1} parent=0 // pred_fallthru
    _
  // Predicated region
  $region10: #{stein_imq_kernel.1} parent=0 // pred_check
    _
  $region11: #{stein_imq_kernel.1} parent=0 // pred_check_branch
    %17 = sbr.rel (0) target = $region13
  $region12: #{stein_imq_kernel.1} parent=0 // pred_region
    _
  $region13: #{stein_imq_kernel.1} parent=0 // pred_fallthru
    _
  // Predicated region
  $region14: #{stein_imq_kernel.1} parent=0 // pred_check
    _
  $region15: #{stein_imq_kernel.1} parent=0 // pred_check_branch
    %19 = sbr.rel (0) target = $region17
  $region16: #{stein_imq_kernel.1} parent=0 // pred_region
    _
  $region17: #{stein_imq_kernel.1} parent=0 // pred_fallthru
    _
  // Predicated region
  $region18: #{stein_imq_kernel.1} parent=0 // pred_check
    _
  $region19: #{stein_imq_kernel.1} parent=0 // pred_check_branch
    %21 = sbr.rel (0) target = $region21
  $region20: #{stein_imq_kernel.1} parent=0 // pred_region
    _
  $region21: #{stein_imq_kernel.1} parent=0 // pred_fallthru
    _
  %p22 = scmp.eq.s32.totalorder 0, 0
  // Predicated region
  $region22: #{stein_imq_kernel.1} parent=0 // pred_check
    %p23 = pneg %p22
  $region23: #{stein_imq_kernel.1} parent=0 // pred_check_branch
    %25 = sbr.rel (%p23) target = $region25
  $region24: #{stein_imq_kernel.1} parent=0 // pred_region
    %v26 = vld [vmem:[%s0] sm:$0xff]
    %v27 = vld [vmem:[%s2] sm:$0xff]
    %v28 = vld [vmem:[%s2 + $0x8] sm:$0xff]
    %v29 = vld [vmem:[%s2 + $0x10] sm:$0xff]
    %v30 = vld [vmem:[%s2 + $0x18] sm:$0xff]
    %v31 = vld [vmem:[%s2 + $0x20] sm:$0xff]
    %v32 = vld [vmem:[%s2 + $0x28] sm:$0xff]
    %v33 = vld [vmem:[%s2 + $0x30] sm:$0xff]
    %v34 = vld [vmem:[%s2 + $0x38] sm:$0xff]
    %vm35 = vcmask 261120
    %v37 = vsel %vm35, %v26, 0
    %v39 = vand.u32 %v28, 4294901760
    %40 = vmatprep.subr.mxu0 %v39
    %v41 = vand.u32 %v27, 4294901760
    %42 = vmatpush1.msra.mxu0 %v41
    %v43 = vand.u32 %v30, 4294901760
    %44 = vmatprep.subr.mxu0 %v43
    %v45 = vand.u32 %v29, 4294901760
    %46 = vmatpush1.msra.mxu0 %v45
    %v47 = vand.u32 %v32, 4294901760
    %48 = vmatprep.subr.mxu0 %v47
    %v49 = vand.u32 %v31, 4294901760
    %50 = vmatpush1.msra.mxu0 %v49
    %v51 = vand.u32 %v34, 4294901760
    %52 = vmatprep.subr.mxu0 %v51
    %v53 = vand.u32 %v33, 4294901760
    %54 = vmatpush1.msra.mxu0 %v53
    %55 = vmatprep.subr.mxu0 0.0
    %56 = vmatpush1.msra.mxu0 0.0
    %57 = vmatprep.subr.mxu0 0.0
    %58 = vmatpush1.msra.mxu0 0.0
    %59 = vmatprep.subr.mxu0 0.0
    %60 = vmatpush1.msra.mxu0 0.0
    %61 = vmatprep.subr.mxu0 0.0
    %62 = vmatpush1.msra.mxu0 0.0
    %63 = vmatprep.subr.mxu0 0.0
    %64 = vmatpush1.msra.mxu0 0.0
    %65 = vmatprep.subr.mxu0 0.0
    %66 = vmatpush1.msra.mxu0 0.0
    %67 = vmatprep.subr.mxu0 0.0
    %68 = vmatpush1.msra.mxu0 0.0
    %69 = vmatprep.subr.mxu0 0.0
    %70 = vmatpush1.msra.mxu0 0.0
    %71 = vmatprep.subr.mxu0 0.0
    %72 = vmatpush1.msra.mxu0 0.0
    %73 = vmatprep.subr.mxu0 0.0
    %74 = vmatpush1.msra.mxu0 0.0
    %75 = vmatprep.subr.mxu0 0.0
    %76 = vmatpush1.msra.mxu0 0.0
    %77 = vmatprep.subr.mxu0 0.0
    %78 = vmatpush1.msra.mxu0 0.0
    %79 = vmatprep.subr.mxu0 0.0
    %80 = vmatpush1.msra.mxu0 0.0
    %81 = vmatprep.subr.mxu0 0.0
    %82 = vmatpush1.msra.mxu0 0.0
    %83 = vmatprep.subr.mxu0 0.0
    %84 = vmatpush1.msra.mxu0 0.0
    %85 = vmatprep.subr.mxu0 0.0
    %86 = vmatpush1.msra.mxu0 0.0
    %87 = vmatprep.subr.mxu0 0.0
    %88 = vmatpush1.msra.mxu0 0.0
    %89 = vmatprep.subr.mxu0 0.0
    %90 = vmatpush1.msra.mxu0 0.0
    %91 = vmatprep.subr.mxu0 0.0
    %92 = vmatpush1.msra.mxu0 0.0
    %93 = vmatprep.subr.mxu0 0.0
    %94 = vmatpush1.msra.mxu0 0.0
    %95 = vmatprep.subr.mxu0 0.0
    %96 = vmatpush1.msra.mxu0 0.0
    %97 = vmatprep.subr.mxu0 0.0
    %98 = vmatpush1.msra.mxu0 0.0
    %99 = vmatprep.subr.mxu0 0.0
    %100 = vmatpush1.msra.mxu0 0.0
    %101 = vmatprep.subr.mxu0 0.0
    %102 = vmatpush1.msra.mxu0 0.0
    %103 = vmatprep.subr.mxu0 0.0
    %104 = vmatpush1.msra.mxu0 0.0
    %105 = vmatprep.subr.mxu0 0.0
    %106 = vmatpush1.msra.mxu0 0.0
    %107 = vmatprep.subr.mxu0 0.0
    %108 = vmatpush1.msra.mxu0 0.0
    %109 = vmatprep.subr.mxu0 0.0
    %110 = vmatpush1.msra.mxu0 0.0
    %111 = vmatprep.mubr.f32.mxu0 0.0
    %v112 = vand.u32 %v37, 4294901760
    %v113 = vsub.f32 %v37, %v112
    %v114 = vand.u32 %v113, 4294901760
    %v115 = vsub.f32 %v113, %v114
    %v116 = vand.u32 %v115, 4294901760
    %117 = vmatmul.mubr.f32.gmra.mrb[0].mxu0 %v116
    %v118 = vpop.f32.mrb[0].mxu0
    %v119 = vadd.f32 0.0, %v118
    %v120 = vpop.f32.mrb[0].mxu0
    %v121 = vadd.f32 0.0, %v120
    %122 = vdwg.mxu0
    %v123 = vand.u32 %v28, 4294901760
    %v124 = vsub.f32 %v28, %v123
    %v125 = vand.u32 %v124, 4294901760
    %v126 = vsub.f32 %v124, %v125
    %v127 = vand.u32 %v126, 4294901760
    %128 = vmatprep.subr.mxu0 %v127
    %v129 = vand.u32 %v27, 4294901760
    %v130 = vsub.f32 %v27, %v129
    %v131 = vand.u32 %v130, 4294901760
    %v132 = vsub.f32 %v130, %v131
    %v133 = vand.u32 %v132, 4294901760
    %134 = vmatpush1.msra.mxu0 %v133
    %v135 = vand.u32 %v30, 4294901760
    %v136 = vsub.f32 %v30, %v135
    %v137 = vand.u32 %v136, 4294901760
    %v138 = vsub.f32 %v136, %v137
    %v139 = vand.u32 %v138, 4294901760
    %140 = vmatprep.subr.mxu0 %v139
    %v141 = vand.u32 %v29, 4294901760
    %v142 = vsub.f32 %v29, %v141
    %v143 = vand.u32 %v142, 4294901760
    %v144 = vsub.f32 %v142, %v143
    %v145 = vand.u32 %v144, 4294901760
    %146 = vmatpush1.msra.mxu0 %v145
    %v147 = vand.u32 %v32, 4294901760
    %v148 = vsub.f32 %v32, %v147
    %v149 = vand.u32 %v148, 4294901760
    %v150 = vsub.f32 %v148, %v149
    %v151 = vand.u32 %v150, 4294901760
    %152 = vmatprep.subr.mxu0 %v151
    %v153 = vand.u32 %v31, 4294901760
    %v154 = vsub.f32 %v31, %v153
    %v155 = vand.u32 %v154, 4294901760
    %v156 = vsub.f32 %v154, %v155
    %v157 = vand.u32 %v156, 4294901760
    %158 = vmatpush1.msra.mxu0 %v157
    %v159 = vand.u32 %v34, 4294901760
    %v160 = vsub.f32 %v34, %v159
    %v161 = vand.u32 %v160, 4294901760
    %v162 = vsub.f32 %v160, %v161
    %v163 = vand.u32 %v162, 4294901760
    %164 = vmatprep.subr.mxu0 %v163
    %v165 = vand.u32 %v33, 4294901760
    %v166 = vsub.f32 %v33, %v165
    %v167 = vand.u32 %v166, 4294901760
    %v168 = vsub.f32 %v166, %v167
    %v169 = vand.u32 %v168, 4294901760
    %170 = vmatpush1.msra.mxu0 %v169
    %171 = vmatprep.subr.mxu0 0.0
    %172 = vmatpush1.msra.mxu0 0.0
    %173 = vmatprep.subr.mxu0 0.0
    %174 = vmatpush1.msra.mxu0 0.0
    %175 = vmatprep.subr.mxu0 0.0
    %176 = vmatpush1.msra.mxu0 0.0
    %177 = vmatprep.subr.mxu0 0.0
    %178 = vmatpush1.msra.mxu0 0.0
    %179 = vmatprep.subr.mxu0 0.0
    %180 = vmatpush1.msra.mxu0 0.0
    %181 = vmatprep.subr.mxu0 0.0
    %182 = vmatpush1.msra.mxu0 0.0
    %183 = vmatprep.subr.mxu0 0.0
    %184 = vmatpush1.msra.mxu0 0.0
    %185 = vmatprep.subr.mxu0 0.0
    %186 = vmatpush1.msra.mxu0 0.0
    %187 = vmatprep.subr.mxu0 0.0
    %188 = vmatpush1.msra.mxu0 0.0
    %189 = vmatprep.subr.mxu0 0.0
    %190 = vmatpush1.msra.mxu0 0.0
    %191 = vmatprep.subr.mxu0 0.0
    %192 = vmatpush1.msra.mxu0 0.0
    %193 = vmatprep.subr.mxu0 0.0
    %194 = vmatpush1.msra.mxu0 0.0
    %195 = vmatprep.subr.mxu0 0.0
    %196 = vmatpush1.msra.mxu0 0.0
    %197 = vmatprep.subr.mxu0 0.0
    %198 = vmatpush1.msra.mxu0 0.0
    %199 = vmatprep.subr.mxu0 0.0
    %200 = vmatpush1.msra.mxu0 0.0
    %201 = vmatprep.subr.mxu0 0.0
    %202 = vmatpush1.msra.mxu0 0.0
    %203 = vmatprep.subr.mxu0 0.0
    %204 = vmatpush1.msra.mxu0 0.0
    %205 = vmatprep.subr.mxu0 0.0
    %206 = vmatpush1.msra.mxu0 0.0
    %207 = vmatprep.subr.mxu0 0.0
    %208 = vmatpush1.msra.mxu0 0.0
    %209 = vmatprep.subr.mxu0 0.0
    %210 = vmatpush1.msra.mxu0 0.0
    %211 = vmatprep.subr.mxu0 0.0
    %212 = vmatpush1.msra.mxu0 0.0
    %213 = vmatprep.subr.mxu0 0.0
    %214 = vmatpush1.msra.mxu0 0.0
    %215 = vmatprep.subr.mxu0 0.0
    %216 = vmatpush1.msra.mxu0 0.0
    %217 = vmatprep.subr.mxu0 0.0
    %218 = vmatpush1.msra.mxu0 0.0
    %219 = vmatprep.subr.mxu0 0.0
    %220 = vmatpush1.msra.mxu0 0.0
    %221 = vmatprep.subr.mxu0 0.0
    %222 = vmatpush1.msra.mxu0 0.0
    %223 = vmatprep.subr.mxu0 0.0
    %224 = vmatpush1.msra.mxu0 0.0
    %225 = vmatprep.subr.mxu0 0.0
    %226 = vmatpush1.msra.mxu0 0.0
    %227 = vmatprep.mubr.f32.mxu0 0.0
    %v228 = vand.u32 %v37, 4294901760
    %229 = vmatmul.mubr.f32.gmra.mrb[0].mxu0 %v228
    %v230 = vpop.f32.mrb[0].mxu0
    %v231 = vadd.f32 %v119, %v230
    %v232 = vpop.f32.mrb[0].mxu0
    %v233 = vadd.f32 %v121, %v232
    %234 = vdwg.mxu0
    %v235 = vand.u32 %v28, 4294901760
    %v236 = vsub.f32 %v28, %v235
    %237 = vmatprep.subr.mxu0 %v236
    %v238 = vand.u32 %v27, 4294901760
    %v239 = vsub.f32 %v27, %v238
    %240 = vmatpush1.msra.mxu0 %v239
    %v241 = vand.u32 %v30, 4294901760
    %v242 = vsub.f32 %v30, %v241
    %243 = vmatprep.subr.mxu0 %v242
    %v244 = vand.u32 %v29, 4294901760
    %v245 = vsub.f32 %v29, %v244
    %246 = vmatpush1.msra.mxu0 %v245
    %v247 = vand.u32 %v32, 4294901760
    %v248 = vsub.f32 %v32, %v247
    %249 = vmatprep.subr.mxu0 %v248
    %v250 = vand.u32 %v31, 4294901760
    %v251 = vsub.f32 %v31, %v250
    %252 = vmatpush1.msra.mxu0 %v251
    %v253 = vand.u32 %v34, 4294901760
    %v254 = vsub.f32 %v34, %v253
    %255 = vmatprep.subr.mxu0 %v254
    %v256 = vand.u32 %v33, 4294901760
    %v257 = vsub.f32 %v33, %v256
    %258 = vmatpush1.msra.mxu0 %v257
    %259 = vmatprep.subr.mxu0 0.0
    %260 = vmatpush1.msra.mxu0 0.0
    %261 = vmatprep.subr.mxu0 0.0
    %262 = vmatpush1.msra.mxu0 0.0
    %263 = vmatprep.subr.mxu0 0.0
    %264 = vmatpush1.msra.mxu0 0.0
    %265 = vmatprep.subr.mxu0 0.0
    %266 = vmatpush1.msra.mxu0 0.0
    %267 = vmatprep.subr.mxu0 0.0
    %268 = vmatpush1.msra.mxu0 0.0
    %269 = vmatprep.subr.mxu0 0.0
    %270 = vmatpush1.msra.mxu0 0.0
    %271 = vmatprep.subr.mxu0 0.0
    %272 = vmatpush1.msra.mxu0 0.0
    %273 = vmatprep.subr.mxu0 0.0
    %274 = vmatpush1.msra.mxu0 0.0
    %275 = vmatprep.subr.mxu0 0.0
    %276 = vmatpush1.msra.mxu0 0.0
    %277 = vmatprep.subr.mxu0 0.0
    %278 = vmatpush1.msra.mxu0 0.0
    %279 = vmatprep.subr.mxu0 0.0
    %280 = vmatpush1.msra.mxu0 0.0
    %281 = vmatprep.subr.mxu0 0.0
    %282 = vmatpush1.msra.mxu0 0.0
    %283 = vmatprep.subr.mxu0 0.0
    %284 = vmatpush1.msra.mxu0 0.0
    %285 = vmatprep.subr.mxu0 0.0
    %286 = vmatpush1.msra.mxu0 0.0
    %287 = vmatprep.subr.mxu0 0.0
    %288 = vmatpush1.msra.mxu0 0.0
    %289 = vmatprep.subr.mxu0 0.0
    %290 = vmatpush1.msra.mxu0 0.0
    %291 = vmatprep.subr.mxu0 0.0
    %292 = vmatpush1.msra.mxu0 0.0
    %293 = vmatprep.subr.mxu0 0.0
    %294 = vmatpush1.msra.mxu0 0.0
    %295 = vmatprep.subr.mxu0 0.0
    %296 = vmatpush1.msra.mxu0 0.0
    %297 = vmatprep.subr.mxu0 0.0
    %298 = vmatpush1.msra.mxu0 0.0
    %299 = vmatprep.subr.mxu0 0.0
    %300 = vmatpush1.msra.mxu0 0.0
    %301 = vmatprep.subr.mxu0 0.0
    %302 = vmatpush1.msra.mxu0 0.0
    %303 = vmatprep.subr.mxu0 0.0
    %304 = vmatpush1.msra.mxu0 0.0
    %305 = vmatprep.subr.mxu0 0.0
    %306 = vmatpush1.msra.mxu0 0.0
    %307 = vmatprep.subr.mxu0 0.0
    %308 = vmatpush1.msra.mxu0 0.0
    %309 = vmatprep.subr.mxu0 0.0
    %310 = vmatpush1.msra.mxu0 0.0
    %311 = vmatprep.subr.mxu0 0.0
    %312 = vmatpush1.msra.mxu0 0.0
    %313 = vmatprep.subr.mxu0 0.0
    %314 = vmatpush1.msra.mxu0 0.0
    %315 = vmatprep.mubr.f32.mxu0 0.0
    %v316 = vand.u32 %v37, 4294901760
    %v317 = vsub.f32 %v37, %v316
    %318 = vmatmul.mubr.f32.gmra.mrb[0].mxu0 %v317
    %v319 = vpop.f32.mrb[0].mxu0
    %v320 = vadd.f32 %v231, %v319
    %v321 = vpop.f32.mrb[0].mxu0
    %v322 = vadd.f32 %v233, %v321
    %323 = vdwg.mxu0
    %v324 = vand.u32 %v28, 4294901760
    %325 = vmatprep.subr.mxu0 %v324
    %v326 = vand.u32 %v27, 4294901760
    %327 = vmatpush1.msra.mxu0 %v326
    %v328 = vand.u32 %v30, 4294901760
    %329 = vmatprep.subr.mxu0 %v328
    %v330 = vand.u32 %v29, 4294901760
    %331 = vmatpush1.msra.mxu0 %v330
    %v332 = vand.u32 %v32, 4294901760
    %333 = vmatprep.subr.mxu0 %v332
    %v334 = vand.u32 %v31, 4294901760
    %335 = vmatpush1.msra.mxu0 %v334
    %v336 = vand.u32 %v34, 4294901760
    %337 = vmatprep.subr.mxu0 %v336
    %v338 = vand.u32 %v33, 4294901760
    %339 = vmatpush1.msra.mxu0 %v338
    %340 = vmatprep.subr.mxu0 0.0
    %341 = vmatpush1.msra.mxu0 0.0
    %342 = vmatprep.subr.mxu0 0.0
    %343 = vmatpush1.msra.mxu0 0.0
    %344 = vmatprep.subr.mxu0 0.0
    %345 = vmatpush1.msra.mxu0 0.0
    %346 = vmatprep.subr.mxu0 0.0
    %347 = vmatpush1.msra.mxu0 0.0
    %348 = vmatprep.subr.mxu0 0.0
    %349 = vmatpush1.msra.mxu0 0.0
    %350 = vmatprep.subr.mxu0 0.0
    %351 = vmatpush1.msra.mxu0 0.0
    %352 = vmatprep.subr.mxu0 0.0
    %353 = vmatpush1.msra.mxu0 0.0
    %354 = vmatprep.subr.mxu0 0.0
    %355 = vmatpush1.msra.mxu0 0.0
    %356 = vmatprep.subr.mxu0 0.0
    %357 = vmatpush1.msra.mxu0 0.0
    %358 = vmatprep.subr.mxu0 0.0
    %359 = vmatpush1.msra.mxu0 0.0
    %360 = vmatprep.subr.mxu0 0.0
    %361 = vmatpush1.msra.mxu0 0.0
    %362 = vmatprep.subr.mxu0 0.0
    %363 = vmatpush1.msra.mxu0 0.0
    %364 = vmatprep.subr.mxu0 0.0
    %365 = vmatpush1.msra.mxu0 0.0
    %366 = vmatprep.subr.mxu0 0.0
    %367 = vmatpush1.msra.mxu0 0.0
    %368 = vmatprep.subr.mxu0 0.0
    %369 = vmatpush1.msra.mxu0 0.0
    %370 = vmatprep.subr.mxu0 0.0
    %371 = vmatpush1.msra.mxu0 0.0
    %372 = vmatprep.subr.mxu0 0.0
    %373 = vmatpush1.msra.mxu0 0.0
    %374 = vmatprep.subr.mxu0 0.0
    %375 = vmatpush1.msra.mxu0 0.0
    %376 = vmatprep.subr.mxu0 0.0
    %377 = vmatpush1.msra.mxu0 0.0
    %378 = vmatprep.subr.mxu0 0.0
    %379 = vmatpush1.msra.mxu0 0.0
    %380 = vmatprep.subr.mxu0 0.0
    %381 = vmatpush1.msra.mxu0 0.0
    %382 = vmatprep.subr.mxu0 0.0
    %383 = vmatpush1.msra.mxu0 0.0
    %384 = vmatprep.subr.mxu0 0.0
    %385 = vmatpush1.msra.mxu0 0.0
    %386 = vmatprep.subr.mxu0 0.0
    %387 = vmatpush1.msra.mxu0 0.0
    %388 = vmatprep.subr.mxu0 0.0
    %389 = vmatpush1.msra.mxu0 0.0
    %390 = vmatprep.subr.mxu0 0.0
    %391 = vmatpush1.msra.mxu0 0.0
    %392 = vmatprep.subr.mxu0 0.0
    %393 = vmatpush1.msra.mxu0 0.0
    %394 = vmatprep.subr.mxu0 0.0
    %395 = vmatpush1.msra.mxu0 0.0
    %396 = vmatprep.mubr.f32.mxu0 0.0
    %v397 = vand.u32 %v37, 4294901760
    %v398 = vsub.f32 %v37, %v397
    %v399 = vand.u32 %v398, 4294901760
    %400 = vmatmul.mubr.f32.gmra.mrb[0].mxu0 %v399
    %v401 = vpop.f32.mrb[0].mxu0
    %v402 = vadd.f32 %v320, %v401
    %v403 = vpop.f32.mrb[0].mxu0
    %v404 = vadd.f32 %v322, %v403
    %405 = vdwg.mxu0
    %v406 = vand.u32 %v28, 4294901760
    %v407 = vsub.f32 %v28, %v406
    %v408 = vand.u32 %v407, 4294901760
    %409 = vmatprep.subr.mxu0 %v408
    %v410 = vand.u32 %v27, 4294901760
    %v411 = vsub.f32 %v27, %v410
    %v412 = vand.u32 %v411, 4294901760
    %413 = vmatpush1.msra.mxu0 %v412
    %v414 = vand.u32 %v30, 4294901760
    %v415 = vsub.f32 %v30, %v414
    %v416 = vand.u32 %v415, 4294901760
    %417 = vmatprep.subr.mxu0 %v416
    %v418 = vand.u32 %v29, 4294901760
    %v419 = vsub.f32 %v29, %v418
    %v420 = vand.u32 %v419, 4294901760
    %421 = vmatpush1.msra.mxu0 %v420
    %v422 = vand.u32 %v32, 4294901760
    %v423 = vsub.f32 %v32, %v422
    %v424 = vand.u32 %v423, 4294901760
    %425 = vmatprep.subr.mxu0 %v424
    %v426 = vand.u32 %v31, 4294901760
    %v427 = vsub.f32 %v31, %v426
    %v428 = vand.u32 %v427, 4294901760
    %429 = vmatpush1.msra.mxu0 %v428
    %v430 = vand.u32 %v34, 4294901760
    %v431 = vsub.f32 %v34, %v430
    %v432 = vand.u32 %v431, 4294901760
    %433 = vmatprep.subr.mxu0 %v432
    %v434 = vand.u32 %v33, 4294901760
    %v435 = vsub.f32 %v33, %v434
    %v436 = vand.u32 %v435, 4294901760
    %437 = vmatpush1.msra.mxu0 %v436
    %438 = vmatprep.subr.mxu0 0.0
    %439 = vmatpush1.msra.mxu0 0.0
    %440 = vmatprep.subr.mxu0 0.0
    %441 = vmatpush1.msra.mxu0 0.0
    %442 = vmatprep.subr.mxu0 0.0
    %443 = vmatpush1.msra.mxu0 0.0
    %444 = vmatprep.subr.mxu0 0.0
    %445 = vmatpush1.msra.mxu0 0.0
    %446 = vmatprep.subr.mxu0 0.0
    %447 = vmatpush1.msra.mxu0 0.0
    %448 = vmatprep.subr.mxu0 0.0
    %449 = vmatpush1.msra.mxu0 0.0
    %450 = vmatprep.subr.mxu0 0.0
    %451 = vmatpush1.msra.mxu0 0.0
    %452 = vmatprep.subr.mxu0 0.0
    %453 = vmatpush1.msra.mxu0 0.0
    %454 = vmatprep.subr.mxu0 0.0
    %455 = vmatpush1.msra.mxu0 0.0
    %456 = vmatprep.subr.mxu0 0.0
    %457 = vmatpush1.msra.mxu0 0.0
    %458 = vmatprep.subr.mxu0 0.0
    %459 = vmatpush1.msra.mxu0 0.0
    %460 = vmatprep.subr.mxu0 0.0
    %461 = vmatpush1.msra.mxu0 0.0
    %462 = vmatprep.subr.mxu0 0.0
    %463 = vmatpush1.msra.mxu0 0.0
    %464 = vmatprep.subr.mxu0 0.0
    %465 = vmatpush1.msra.mxu0 0.0
    %466 = vmatprep.subr.mxu0 0.0
    %467 = vmatpush1.msra.mxu0 0.0
    %468 = vmatprep.subr.mxu0 0.0
    %469 = vmatpush1.msra.mxu0 0.0
    %470 = vmatprep.subr.mxu0 0.0
    %471 = vmatpush1.msra.mxu0 0.0
    %472 = vmatprep.subr.mxu0 0.0
    %473 = vmatpush1.msra.mxu0 0.0
    %474 = vmatprep.subr.mxu0 0.0
    %475 = vmatpush1.msra.mxu0 0.0
    %476 = vmatprep.subr.mxu0 0.0
    %477 = vmatpush1.msra.mxu0 0.0
    %478 = vmatprep.subr.mxu0 0.0
    %479 = vmatpush1.msra.mxu0 0.0
    %480 = vmatprep.subr.mxu0 0.0
    %481 = vmatpush1.msra.mxu0 0.0
    %482 = vmatprep.subr.mxu0 0.0
    %483 = vmatpush1.msra.mxu0 0.0
    %484 = vmatprep.subr.mxu0 0.0
    %485 = vmatpush1.msra.mxu0 0.0
    %486 = vmatprep.subr.mxu0 0.0
    %487 = vmatpush1.msra.mxu0 0.0
    %488 = vmatprep.subr.mxu0 0.0
    %489 = vmatpush1.msra.mxu0 0.0
    %490 = vmatprep.subr.mxu0 0.0
    %491 = vmatpush1.msra.mxu0 0.0
    %492 = vmatprep.subr.mxu0 0.0
    %493 = vmatpush1.msra.mxu0 0.0
    %494 = vmatprep.mubr.f32.mxu0 0.0
    %v495 = vand.u32 %v37, 4294901760
    %496 = vmatmul.mubr.f32.gmra.mrb[0].mxu0 %v495
    %v497 = vpop.f32.mrb[0].mxu0
    %v498 = vadd.f32 %v402, %v497
    %v499 = vpop.f32.mrb[0].mxu0
    %v500 = vadd.f32 %v404, %v499
    %501 = vdwg.mxu0
    %v502 = vand.u32 %v28, 4294901760
    %503 = vmatprep.subr.mxu0 %v502
    %v504 = vand.u32 %v27, 4294901760
    %505 = vmatpush1.msra.mxu0 %v504
    %v506 = vand.u32 %v30, 4294901760
    %507 = vmatprep.subr.mxu0 %v506
    %v508 = vand.u32 %v29, 4294901760
    %509 = vmatpush1.msra.mxu0 %v508
    %v510 = vand.u32 %v32, 4294901760
    %511 = vmatprep.subr.mxu0 %v510
    %v512 = vand.u32 %v31, 4294901760
    %513 = vmatpush1.msra.mxu0 %v512
    %v514 = vand.u32 %v34, 4294901760
    %515 = vmatprep.subr.mxu0 %v514
    %v516 = vand.u32 %v33, 4294901760
    %517 = vmatpush1.msra.mxu0 %v516
    %518 = vmatprep.subr.mxu0 0.0
    %519 = vmatpush1.msra.mxu0 0.0
    %520 = vmatprep.subr.mxu0 0.0
    %521 = vmatpush1.msra.mxu0 0.0
    %522 = vmatprep.subr.mxu0 0.0
    %523 = vmatpush1.msra.mxu0 0.0
    %524 = vmatprep.subr.mxu0 0.0
    %525 = vmatpush1.msra.mxu0 0.0
    %526 = vmatprep.subr.mxu0 0.0
    %527 = vmatpush1.msra.mxu0 0.0
    %528 = vmatprep.subr.mxu0 0.0
    %529 = vmatpush1.msra.mxu0 0.0
    %530 = vmatprep.subr.mxu0 0.0
    %531 = vmatpush1.msra.mxu0 0.0
    %532 = vmatprep.subr.mxu0 0.0
    %533 = vmatpush1.msra.mxu0 0.0
    %534 = vmatprep.subr.mxu0 0.0
    %535 = vmatpush1.msra.mxu0 0.0
    %536 = vmatprep.subr.mxu0 0.0
    %537 = vmatpush1.msra.mxu0 0.0
    %538 = vmatprep.subr.mxu0 0.0
    %539 = vmatpush1.msra.mxu0 0.0
    %540 = vmatprep.subr.mxu0 0.0
    %541 = vmatpush1.msra.mxu0 0.0
    %542 = vmatprep.subr.mxu0 0.0
    %543 = vmatpush1.msra.mxu0 0.0
    %544 = vmatprep.subr.mxu0 0.0
    %545 = vmatpush1.msra.mxu0 0.0
    %546 = vmatprep.subr.mxu0 0.0
    %547 = vmatpush1.msra.mxu0 0.0
    %548 = vmatprep.subr.mxu0 0.0
    %549 = vmatpush1.msra.mxu0 0.0
    %550 = vmatprep.subr.mxu0 0.0
    %551 = vmatpush1.msra.mxu0 0.0
    %552 = vmatprep.subr.mxu0 0.0
    %553 = vmatpush1.msra.mxu0 0.0
    %554 = vmatprep.subr.mxu0 0.0
    %555 = vmatpush1.msra.mxu0 0.0
    %556 = vmatprep.subr.mxu0 0.0
    %557 = vmatpush1.msra.mxu0 0.0
    %558 = vmatprep.subr.mxu0 0.0
    %559 = vmatpush1.msra.mxu0 0.0
    %560 = vmatprep.subr.mxu0 0.0
    %561 = vmatpush1.msra.mxu0 0.0
    %562 = vmatprep.subr.mxu0 0.0
    %563 = vmatpush1.msra.mxu0 0.0
    %564 = vmatprep.subr.mxu0 0.0
    %565 = vmatpush1.msra.mxu0 0.0
    %566 = vmatprep.subr.mxu0 0.0
    %567 = vmatpush1.msra.mxu0 0.0
    %568 = vmatprep.subr.mxu0 0.0
    %569 = vmatpush1.msra.mxu0 0.0
    %570 = vmatprep.subr.mxu0 0.0
    %571 = vmatpush1.msra.mxu0 0.0
    %572 = vmatprep.subr.mxu0 0.0
    %573 = vmatpush1.msra.mxu0 0.0
    %574 = vmatprep.mubr.f32.mxu0 0.0
    %v575 = vand.u32 %v37, 4294901760
    %576 = vmatmul.mubr.f32.gmra.mrb[0].mxu0 %v575
    %v577 = vpop.f32.mrb[0].mxu0
    %v578 = vadd.f32 %v498, %v577
    %v579 = vpop.f32.mrb[0].mxu0
    %v580 = vadd.f32 %v500, %v579
    %581 = vdwg.mxu0
    %582 = vst [vmem:[#allocation2] sm:$0xff] %v578
    %583 = vst [vmem:[#allocation2 + $0x8] sm:$0xff] %v580
  $region25: #{stein_imq_kernel.1} parent=0 // pred_fallthru
    _
  %v584 = vld [vmem:[%s1] sm:$0x3]
  %v585 = vld [vmem:[#allocation2] sm:$0xff]
  %v586 = vld [vmem:[#allocation2 + $0x8] sm:$0xff]
  %v588 = vlaneseq
  %v589 = vshrl.u32 %v588, 7
  %v590 = vsub.s32 0, %v589
  %v591 = vrot.slane %v584, %v590
  %v592 = vlaneseq
  %v593 = vshrl.u32 %v592, 7
  %v594 = vsub.s32 1, %v593
  %v595 = vrot.slane %v584, %v594
  %v598 = vsub.f32 %v591, %v585
  %v599 = vsub.f32 %v595, %v586
  %v600 = vld [vmem:[%s3] sm:$0x3]
  %v601 = vmul.f32 %v598, %v598
  %v602 = vmul.f32 %v599, %v599
  %v604 = vlaneseq
  %v605 = vshrl.u32 %v604, 7
  %v606 = vsub.s32 0, %v605
  %v607 = vrot.slane %v600, %v606
  %v608 = vlaneseq
  %v609 = vshrl.u32 %v608, 7
  %v610 = vsub.s32 1, %v609
  %v611 = vrot.slane %v600, %v610
  %v614 = vadd.f32 %v607, %v601
  %v615 = vadd.f32 %v611, %v602
  %v616 = vrcp.pop %v614
  %v617 = vrcp.pop %v615
  %v618 = vlog2.pop %v614
  %v619 = vmul.f32 %v618, 0.6931472
  %v620 = vlog2.pop %v615
  %v621 = vmul.f32 %v620, 0.6931472
  %v622 = vmul.f32 %v619, -0.5
  %v623 = vmul.f32 %v621, -0.5
  %v624 = vld [vmem:[%s4] sm:$0x3]
  %v626 = vlaneseq
  %v627 = vshrl.u32 %v626, 7
  %v628 = vsub.s32 0, %v627
  %v629 = vrot.slane %v624, %v628
  %v630 = vlaneseq
  %v631 = vshrl.u32 %v630, 7
  %v632 = vsub.s32 1, %v631
  %v633 = vrot.slane %v624, %v632
  %v636 = vsub.f32 %v622, %v629
  %v637 = vsub.f32 %v623, %v633
  %638 = vst [vmem:[%s5] sm:$0xff] %v636
  %639 = vst [vmem:[%s5 + $0x8] sm:$0xff] %v637
  %v640 = vmul.f32 %v598, -1.0
  %v641 = vmul.f32 %v599, -1.0
  %v642 = vmul.f32 %v640, %v616
  %v643 = vmul.f32 %v641, %v617
  %644 = vst [vmem:[%s6] sm:$0xff] %v642
  %645 = vst [vmem:[%s6 + $0x8] sm:$0xff] %v643
  // Predicated region
  $region26: #{stein_imq_kernel.1} parent=0 // pred_check
    _
  $region27: #{stein_imq_kernel.1} parent=0 // pred_check_branch
    %647 = sbr.rel (0) target = $region29
  $region28: #{stein_imq_kernel.1} parent=0 // pred_region
    _
  $region29: #{stein_imq_kernel.1} parent=0 // pred_fallthru
    _
  // Predicated region
  $region30: #{stein_imq_kernel.1} parent=0 // pred_check
    _
  $region31: #{stein_imq_kernel.1} parent=0 // pred_check_branch
    %649 = sbr.rel (0) target = $region33
  $region32: #{stein_imq_kernel.1} parent=0 // pred_region
    _
  $region33: #{stein_imq_kernel.1} parent=0 // pred_fallthru
    _
  // Predicated region
  $region34: #{stein_imq_kernel.1} parent=0 // pred_check
    _
  $region35: #{stein_imq_kernel.1} parent=0 // pred_check_branch
    %651 = sbr.rel (0) target = $region37
  $region36: #{stein_imq_kernel.1} parent=0 // pred_region
    _
  $region37: #{stein_imq_kernel.1} parent=0 // pred_fallthru
    _
  // Predicated region
  $region38: #{stein_imq_kernel.1} parent=0 // pred_check
    _
  $region39: #{stein_imq_kernel.1} parent=0 // pred_check_branch
    %653 = sbr.rel (0) target = $region41
  $region40: #{stein_imq_kernel.1} parent=0 // pred_region
    _
  $region41: #{stein_imq_kernel.1} parent=0 // pred_fallthru
    _

</llo_original>
